<compile_context>
chip_gen: v7x
topology: tpu7x:2x2x1
jax: 0.10.0
libtpu: 0.0.40
codegen_flags: <defaults>
</compile_context>

<pallas_src>
import jax
import jax.numpy as jnp
from jax.experimental import pallas as pl
from jax.experimental.pallas import tpu as pltpu


def vqa_kernel(img_pooled_ref, text_ref, add_mask_ref, b_attn_ref,
               w_fc_ref, b_fc_ref, w_attn_ref, w_cls_ref, b_cls_ref,
               out_ref):
    # ---------------- image branch: resnet.fc Linear (C -> IMG_DIM) ----------
    img_feat = (jnp.dot(img_pooled_ref[...], w_fc_ref[...],
                        preferred_element_type=jnp.float32)
                + b_fc_ref[...])                                    # (TB, IMG_DIM)

    # ---------------- attention pooling over text tokens ---------------------
    feats = text_ref[...]                                           # (TB, T, H)
    w_attn = w_attn_ref[...]                                        # (1, H)
    scores = jnp.sum(feats * w_attn[None, :, :], axis=-1)           # (TB, T)
    # scalar bias from SMEM + precomputed additive mask (0 or -1e30)
    scores = scores + b_attn_ref[0, 0] + add_mask_ref[...]
    m = jnp.max(scores, axis=-1, keepdims=True)
    e = jnp.exp(scores - m)                                         # unnormalized weights
    denom = jnp.sum(e, axis=-1, keepdims=True)                      # (TB, 1)
    # TODO(synk): at production T/H route this weighted sum through the MXU
    # (batched einsum); at toy sizes the VPU multiply+reduce is fine.
    pooled = jnp.sum(e[:, :, None] * feats, axis=1)                 # (TB, H)
    pooled = pooled * pl.reciprocal(denom, approx=True)             # normalize on EUP

    # ---------------- concat + classifier (single fused weight) --------------
    # cat((img_feat, pooled), 1) @ W_cls  computed as two accumulating MXU dots
    # on sublane-aligned slices of the single classifier weight (toy widths
    # 64/32 are not lane-aligned; at real dims concat activations instead).
    w_cls = w_cls_ref[...]                                          # (IMG_DIM+H, A_pad)
    img_dim = img_feat.shape[-1]
    logits = (jnp.dot(img_feat, w_cls[:img_dim, :],
                      preferred_element_type=jnp.float32)
              + jnp.dot(pooled, w_cls[img_dim:, :],
                        preferred_element_type=jnp.float32)
              + b_cls_ref[...])                                     # (TB, A_pad)
    out_ref[...] = logits.astype(out_ref.dtype)


def vqa_forward(images, question, padding_mask, params, *,
                batch_tile=8, vmem_limit_bytes=32 * 1024 * 1024):
    B, C = images.shape[0], images.shape[1]
    T = question.shape[1]
    H = params["embedding"].shape[1]
    IMG_DIM = params["w_fc"].shape[1]
    A = params["b_cls"].shape[1]

    # ---------------- plain-JAX glue (backbones stubbed) ---------------------
    # TODO(synk): resnet50 conv backbone not reproducible here; stubbed as
    # global average pooling over spatial (its fc Linear runs in the kernel).
    img_pooled = images.astype(jnp.float32).mean(axis=(2, 3))       # (B, C)
    # TODO(synk): GPT-2 transformer stack not implemented; last_hidden_state
    # approximated by the (resized) token-embedding lookup.
    text_feats = params["embedding"][question].astype(jnp.float32)  # (B, T, H)
    # additive mask: 0 where valid, -1e30 where padded (finite -> no NaN even
    # for fully-masked rows)
    add_mask = jnp.where(padding_mask == 0, -1e30, 0.0).astype(jnp.float32)

    # ---------------- padding for sublane/lane density -----------------------
    TB = batch_tile
    B_pad = ((B + TB - 1) // TB) * TB
    A_pad = ((A + 127) // 128) * 128

    img_pooled = jnp.pad(img_pooled, ((0, B_pad - B), (0, 0)))
    text_feats = jnp.pad(text_feats, ((0, B_pad - B), (0, 0), (0, 0)))
    add_mask = jnp.pad(add_mask, ((0, B_pad - B), (0, 0)))
    w_cls = jnp.pad(params["w_cls"], ((0, 0), (0, A_pad - A)))
    b_cls = jnp.pad(params["b_cls"], ((0, 0), (0, A_pad - A)))

    grid = (B_pad // TB,)

    out = pl.pallas_call(
        vqa_kernel,
        out_shape=jax.ShapeDtypeStruct((B_pad, A_pad), jnp.float32),
        grid=grid,
        in_specs=[
            # batch-sliced activations
            pl.BlockSpec((TB, C), lambda i: (i, 0)),
            pl.BlockSpec((TB, T, H), lambda i: (i, 0, 0)),
            pl.BlockSpec((TB, T), lambda i: (i, 0)),
            # scalar attention bias in SMEM
            pl.BlockSpec(memory_space=pltpu.MemorySpace.SMEM),
            # weights: constant block index -> VMEM-resident across the grid
            pl.BlockSpec((C, IMG_DIM), lambda i: (0, 0)),
            pl.BlockSpec((1, IMG_DIM), lambda i: (0, 0)),
            pl.BlockSpec((1, H), lambda i: (0, 0)),
            pl.BlockSpec((IMG_DIM + H, A_pad), lambda i: (0, 0)),
            pl.BlockSpec((1, A_pad), lambda i: (0, 0)),
        ],
        out_specs=pl.BlockSpec((TB, A_pad), lambda i: (i, 0)),
        compiler_params=pltpu.CompilerParams(
            dimension_semantics=("parallel",),      # megacore sharding on v7x
            vmem_limit_bytes=vmem_limit_bytes),
    )(img_pooled, text_feats, add_mask, params["b_attn"],
      params["w_fc"], params["b_fc"], params["w_attn"], w_cls, b_cls)

    return out[:B, :A]


def reference(images, question, padding_mask, params):
    img_pooled = images.mean(axis=(2, 3))
    img_feat = img_pooled @ params["w_fc"] + params["b_fc"][0]
    feats = params["embedding"][question]
    scores = (jnp.einsum("bth,h->bt", feats, params["w_attn"][0])
              + params["b_attn"][0, 0])
    scores = jnp.where(padding_mask == 0, -jnp.inf, scores)
    w = jax.nn.softmax(scores, axis=1)
    pooled = jnp.sum(w[:, :, None] * feats, axis=1)
    combined = jnp.concatenate([img_feat, pooled], axis=1)
    return combined @ params["w_cls"] + params["b_cls"][0]


if __name__ == "__main__":
    # Small, deterministic stand-in shapes.
    B, C, S = 2, 4, 16            # batch, pooled image channels, spatial (16x16)
    T, H = 8, 32                  # seq len, gpt2 hidden stand-in (768 real)
    IMG_DIM = 64                  # resnet.fc output stand-in (512 real)
    A = 48                        # answer classes stand-in (3129 real)
    VOCAB = 50

    key = jax.random.PRNGKey(0)
    ks = jax.random.split(key, 10)

    params = {
        "embedding": jax.random.normal(ks[0], (VOCAB, H), jnp.float32) * 0.1,
        "w_fc":      jax.random.normal(ks[1], (C, IMG_DIM), jnp.float32) * 0.1,
        "b_fc":      jax.random.normal(ks[2], (1, IMG_DIM), jnp.float32) * 0.1,
        "w_attn":    jax.random.normal(ks[3], (1, H), jnp.float32) * 0.1,
        "b_attn":    jax.random.normal(ks[4], (1, 1), jnp.float32) * 0.1,
        # single fused classifier weight, exactly like nn.Linear(IMG_DIM+H, A)
        "w_cls":     jax.random.normal(ks[5], (IMG_DIM + H, A), jnp.float32) * 0.1,
        "b_cls":     jax.random.normal(ks[6], (1, A), jnp.float32) * 0.1,
    }

    images = jax.random.normal(ks[7], (B, C, S, S), jnp.float32)          # NCHW
    question = jax.random.randint(ks[8], (B, T), 0, VOCAB, jnp.int32)
    padding_mask = jnp.array([[1, 1, 1, 1, 1, 0, 0, 0],
                              [1, 1, 1, 0, 0, 0, 0, 0]], dtype=jnp.int32)

    out = jax.block_until_ready(vqa_forward(images, question, padding_mask, params))
    ref = reference(images, question, padding_mask, params)

    assert out.shape == (B, A)
    assert bool(jnp.all(jnp.isfinite(out))), "non-finite logits"
    # tolerance accounts for pl.reciprocal(approx=True) in softmax normalization
    assert jnp.allclose(out, ref, atol=1e-2, rtol=1e-2), "mismatch vs reference"

    print("KERNEL_OK")
</pallas_src>

<mosaic_0001>
module attributes {stable_mosaic.version = 11 : i64} {
  func.func @vqa_kernel(%arg0: i32, %arg1: memref<8x4xf32, #tpu.memory_space<vmem>>, %arg2: memref<8x8x32xf32, #tpu.memory_space<vmem>>, %arg3: memref<8x8xf32, #tpu.memory_space<vmem>>, %arg4: memref<1x1xf32, #tpu.memory_space<smem>>, %arg5: memref<4x64xf32, #tpu.memory_space<vmem>>, %arg6: memref<1x64xf32, #tpu.memory_space<vmem>>, %arg7: memref<1x32xf32, #tpu.memory_space<vmem>>, %arg8: memref<96x128xf32, #tpu.memory_space<vmem>>, %arg9: memref<1x128xf32, #tpu.memory_space<vmem>>, %arg10: memref<8x128xf32, #tpu.memory_space<vmem>>) attributes {dimension_semantics = [#tpu.dimension_semantics<parallel>], iteration_bounds = array<i64: 1>, scalar_prefetch = 0 : i64, scratch_operands = 0 : i64, tpu.core_type = #tpu.core_type<tc>, window_params = [{transform_indices = @transform_0, window_bounds = array<i64: 8, 4>}, {transform_indices = @transform_1, window_bounds = array<i64: 8, 8, 32>}, {transform_indices = @transform_2, window_bounds = array<i64: 8, 8>}, {transform_indices = @transform_3, window_bounds = array<i64: 1, 1>}, {pipeline_mode = #tpu.pipeline_mode<synchronous>, transform_indices = @transform_4, window_bounds = array<i64: 4, 64>}, {pipeline_mode = #tpu.pipeline_mode<synchronous>, transform_indices = @transform_5, window_bounds = array<i64: 1, 64>}, {pipeline_mode = #tpu.pipeline_mode<synchronous>, transform_indices = @transform_6, window_bounds = array<i64: 1, 32>}, {pipeline_mode = #tpu.pipeline_mode<synchronous>, transform_indices = @transform_7, window_bounds = array<i64: 96, 128>}, {pipeline_mode = #tpu.pipeline_mode<synchronous>, transform_indices = @transform_8, window_bounds = array<i64: 1, 128>}, {transform_indices = @transform_9, window_bounds = array<i64: 8, 128>}]} {
    %c0 = arith.constant 0 : index
    %c0_0 = arith.constant 0 : index
    %0 = vector.load %arg1[%c0, %c0_0] : memref<8x4xf32, #tpu.memory_space<vmem>>, vector<8x4xf32>
    %c0_1 = arith.constant 0 : index
    %c0_2 = arith.constant 0 : index
    %1 = vector.load %arg5[%c0_1, %c0_2] : memref<4x64xf32, #tpu.memory_space<vmem>>, vector<4x64xf32>
    %cst = arith.constant dense<0.000000e+00> : vector<8x64xf32>
    %2 = tpu.matmul %0, %1, %cst {dimension_numbers = #tpu.dot_dimension_numbers<[1], [0], [0], [1], [0, 0, 1, 1], [], []>} : vector<8x4xf32>, vector<4x64xf32>, vector<8x64xf32> -> vector<8x64xf32>
    %c0_3 = arith.constant 0 : index
    %c0_4 = arith.constant 0 : index
    %3 = vector.load %arg6[%c0_3, %c0_4] : memref<1x64xf32, #tpu.memory_space<vmem>>, vector<1x64xf32>
    %4 = vector.broadcast %3 : vector<1x64xf32> to vector<8x64xf32>
    %5 = arith.addf %2, %4 : vector<8x64xf32>
    %c0_5 = arith.constant 0 : index
    %c0_6 = arith.constant 0 : index
    %c0_7 = arith.constant 0 : index
    %6 = vector.load %arg2[%c0_5, %c0_6, %c0_7] : memref<8x8x32xf32, #tpu.memory_space<vmem>>, vector<8x8x32xf32>
    %c0_8 = arith.constant 0 : index
    %c0_9 = arith.constant 0 : index
    %7 = vector.load %arg7[%c0_8, %c0_9] : memref<1x32xf32, #tpu.memory_space<vmem>>, vector<1x32xf32>
    %8 = vector.shape_cast %7 : vector<1x32xf32> to vector<1x1x32xf32>
    %9 = vector.broadcast %8 : vector<1x1x32xf32> to vector<8x8x32xf32>
    %10 = arith.mulf %6, %9 : vector<8x8x32xf32>
    %cst_10 = arith.constant dense<0.000000e+00> : vector<8x8xf32>
    %11 = vector.multi_reduction <add>, %10, %cst_10 [2] : vector<8x8x32xf32> to vector<8x8xf32>
    %c0_11 = arith.constant 0 : index
    %c0_12 = arith.constant 0 : index
    %12 = memref.load %arg4[%c0_11, %c0_12] : memref<1x1xf32, #tpu.memory_space<smem>>
    %13 = vector.broadcast %12 : f32 to vector<8x8xf32>
    %14 = arith.addf %11, %13 : vector<8x8xf32>
    %c0_13 = arith.constant 0 : index
    %c0_14 = arith.constant 0 : index
    %15 = vector.load %arg3[%c0_13, %c0_14] : memref<8x8xf32, #tpu.memory_space<vmem>>, vector<8x8xf32>
    %16 = arith.addf %14, %15 : vector<8x8xf32>
    %cst_15 = arith.constant dense<0xFF800000> : vector<8xf32>
    %17 = vector.multi_reduction <maximumf>, %16, %cst_15 [1] : vector<8x8xf32> to vector<8xf32>
    %18 = vector.shape_cast %17 : vector<8xf32> to vector<8x1xf32>
    %19 = vector.broadcast %18 : vector<8x1xf32> to vector<8x8xf32>
    %20 = arith.subf %16, %19 : vector<8x8xf32>
    %21 = math.exp %20 : vector<8x8xf32>
    %cst_16 = arith.constant dense<0.000000e+00> : vector<8xf32>
    %22 = vector.multi_reduction <add>, %21, %cst_16 [1] : vector<8x8xf32> to vector<8xf32>
    %23 = vector.shape_cast %22 : vector<8xf32> to vector<8x1xf32>
    %24 = vector.shape_cast %21 : vector<8x8xf32> to vector<8x8x1xf32>
    %25 = vector.broadcast %24 : vector<8x8x1xf32> to vector<8x8x32xf32>
    %26 = arith.mulf %25, %6 : vector<8x8x32xf32>
    %cst_17 = arith.constant dense<0.000000e+00> : vector<8x32xf32>
    %27 = vector.multi_reduction <add>, %26, %cst_17 [1] : vector<8x8x32xf32> to vector<8x32xf32>
    %28 = tpu.reciprocal %23 {approx = true} : vector<8x1xf32> -> vector<8x1xf32>
    %29 = vector.broadcast %28 : vector<8x1xf32> to vector<8x32xf32>
    %30 = arith.mulf %27, %29 : vector<8x32xf32>
    %c0_18 = arith.constant 0 : index
    %c0_19 = arith.constant 0 : index
    %31 = vector.load %arg8[%c0_18, %c0_19] : memref<96x128xf32, #tpu.memory_space<vmem>>, vector<96x128xf32>
    %32 = vector.extract_strided_slice %31 {offsets = [0, 0], sizes = [64, 128], strides = [1, 1]} : vector<96x128xf32> to vector<64x128xf32>
    %cst_20 = arith.constant dense<0.000000e+00> : vector<8x128xf32>
    %33 = tpu.matmul %5, %32, %cst_20 {dimension_numbers = #tpu.dot_dimension_numbers<[1], [0], [0], [1], [0, 0, 1, 1], [], []>} : vector<8x64xf32>, vector<64x128xf32>, vector<8x128xf32> -> vector<8x128xf32>
    %34 = vector.extract_strided_slice %31 {offsets = [64, 0], sizes = [32, 128], strides = [1, 1]} : vector<96x128xf32> to vector<32x128xf32>
    %cst_21 = arith.constant dense<0.000000e+00> : vector<8x128xf32>
    %35 = tpu.matmul %30, %34, %cst_21 {dimension_numbers = #tpu.dot_dimension_numbers<[1], [0], [0], [1], [0, 0, 1, 1], [], []>} : vector<8x32xf32>, vector<32x128xf32>, vector<8x128xf32> -> vector<8x128xf32>
    %36 = arith.addf %33, %35 : vector<8x128xf32>
    %c0_22 = arith.constant 0 : index
    %c0_23 = arith.constant 0 : index
    %37 = vector.load %arg9[%c0_22, %c0_23] : memref<1x128xf32, #tpu.memory_space<vmem>>, vector<1x128xf32>
    %38 = vector.broadcast %37 : vector<1x128xf32> to vector<8x128xf32>
    %39 = arith.addf %36, %38 : vector<8x128xf32>
    %c0_24 = arith.constant 0 : index
    %c0_25 = arith.constant 0 : index
    %40 = vector.load %arg10[%c0_24, %c0_25] : memref<8x128xf32, #tpu.memory_space<vmem>>, vector<8x128xf32>
    tpu.vector_store %arg10[%c0_24, %c0_25], %39 {strides = array<i32>} : memref<8x128xf32, #tpu.memory_space<vmem>>, vector<8x128xf32>,
    return
  }
  func.func @transform_0(%arg0: i32) -> (i32, i32) {
    %c0_i32 = arith.constant 0 : i32
    %c0_i32_0 = arith.constant 0 : i32
    return %arg0, %c0_i32 : i32, i32
  }
  func.func @transform_1(%arg0: i32) -> (i32, i32, i32) {
    %c0_i32 = arith.constant 0 : i32
    %c0_i32_0 = arith.constant 0 : i32
    %c0_i32_1 = arith.constant 0 : i32
    return %arg0, %c0_i32, %c0_i32_0 : i32, i32, i32
  }
  func.func @transform_2(%arg0: i32) -> (i32, i32) {
    %c0_i32 = arith.constant 0 : i32
    %c0_i32_0 = arith.constant 0 : i32
    return %arg0, %c0_i32 : i32, i32
  }
  func.func @transform_3(%arg0: i32) -> (i32, i32) {
    %c0_i32 = arith.constant 0 : i32
    %c0_i32_0 = arith.constant 0 : i32
    %c0_i32_1 = arith.constant 0 : i32
    return %c0_i32, %c0_i32_0 : i32, i32
  }
  func.func @transform_4(%arg0: i32) -> (i32, i32) {
    %c0_i32 = arith.constant 0 : i32
    %c0_i32_0 = arith.constant 0 : i32
    %c0_i32_1 = arith.constant 0 : i32
    return %c0_i32, %c0_i32_0 : i32, i32
  }
  func.func @transform_5(%arg0: i32) -> (i32, i32) {
    %c0_i32 = arith.constant 0 : i32
    %c0_i32_0 = arith.constant 0 : i32
    %c0_i32_1 = arith.constant 0 : i32
    return %c0_i32, %c0_i32_0 : i32, i32
  }
  func.func @transform_6(%arg0: i32) -> (i32, i32) {
    %c0_i32 = arith.constant 0 : i32
    %c0_i32_0 = arith.constant 0 : i32
    %c0_i32_1 = arith.constant 0 : i32
    return %c0_i32, %c0_i32_0 : i32, i32
  }
  func.func @transform_7(%arg0: i32) -> (i32, i32) {
    %c0_i32 = arith.constant 0 : i32
    %c0_i32_0 = arith.constant 0 : i32
    %c0_i32_1 = arith.constant 0 : i32
    return %c0_i32, %c0_i32_0 : i32, i32
  }
  func.func @transform_8(%arg0: i32) -> (i32, i32) {
    %c0_i32 = arith.constant 0 : i32
    %c0_i32_0 = arith.constant 0 : i32
    %c0_i32_1 = arith.constant 0 : i32
    return %c0_i32, %c0_i32_0 : i32, i32
  }
  func.func @transform_9(%arg0: i32) -> (i32, i32) {
    %c0_i32 = arith.constant 0 : i32
    %c0_i32_0 = arith.constant 0 : i32
    return %arg0, %c0_i32 : i32, i32
  }
}

</mosaic_0001>

<llo_original>
// kernel: tpu_custom_call.1
$region0: #{tpu_custom_call.1}
  #allocation0 [shape = 'u32[]', space=smem, size = 0x4, offset = 0x4, fixed_abs, tag = 'smem constant byte address 0x4 - core index']
  #allocation1 [shape = 'u32[144,128]{1,0:T(1,128)}', space=vmem, size = 0x12000, scoped, tag = 'internal scratch']
  #allocation2 [shape = 'f32[1,1]{1,0:T(1,128)S(6)}', space=smem, size = 0x200, scoped, tag = 'scoped memory for tpu_custom_call.1']
  %s0 = inlined_call_operand.vmem [shape: f32[8,4], index: 0, kind: input, shape index: {}]
  %s1 = inlined_call_operand.hbm [shape: f32[8,8,32], index: 1, kind: input, shape index: {}]
  %s2 = inlined_call_operand.vmem [shape: f32[8,8], index: 2, kind: input, shape index: {}]
  %s3 = inlined_call_operand.<no memory space> [shape: f32[1,1], index: 3, kind: input, shape index: {}]
  %s4 = inlined_call_operand.vmem [shape: f32[4,64], index: 4, kind: input, shape index: {}]
  %s5 = inlined_call_operand.vmem [shape: f32[1,64], index: 5, kind: input, shape index: {}]
  %s6 = inlined_call_operand.vmem [shape: f32[1,32], index: 6, kind: input, shape index: {}]
  %s7 = inlined_call_operand.hbm [shape: f32[96,128], index: 7, kind: input, shape index: {}]
  %s8 = inlined_call_operand.vmem [shape: f32[1,128], index: 8, kind: input, shape index: {}]
  %s9 = inlined_call_operand.hbm [shape: f32[8,128], index: 9, kind: output, shape index: {}]
  %s10 = sld [smem:[#allocation0]]
  $region54: #{tpu_custom_call.1} parent=0
    _
  %s12 = ssub.s32 1, %s10
  %s13 = scalar_select 0, %s12, %s10
  %14 = sst [smem:[#allocation2]] %s3
  $region1: #{tpu_custom_call.1} parent=0
    #allocation3 [shape = 'u8[32768]{0}', space=vmem, size = 0x8000, scoped, tag = 'input window, operand 1, single buffered']
    #allocation4 [shape = 's32[1]{0}', space=sflag, size = 0x4, scoped, tag = 'scoped memory for tpu_custom_call.1']
    #allocation5 [shape = 's32[1]{0}', space=sflag, size = 0x4, scoped, tag = 'scoped memory for tpu_custom_call.1']
    #allocation6 [shape = 'u8[49152]{0}', space=vmem, size = 0xc000, scoped, tag = 'input window, operand 7, single buffered']
    #allocation7 [shape = 's32[1]{0}', space=sflag, size = 0x4, scoped, tag = 'scoped memory for tpu_custom_call.1']
    #allocation8 [shape = 'u8[4096]{0}', space=vmem, size = 0x1000, scoped, tag = 'output window, operand 0, single buffered']
    %15 = vsyncpa [#allocation4], 0
    %16 = vsyncpa [#allocation7], 0
    %17 = vsyncpa [#allocation5], 0
    // Predicated region
    $region2: #{tpu_custom_call.1} parent=1 // pred_check
      _
    $region3: #{tpu_custom_call.1} parent=1 // pred_check_branch
      %19 = sbr.rel (0) target = $region5
    $region4: #{tpu_custom_call.1} parent=1 // pred_region
      _
    $region5: #{tpu_custom_call.1} parent=1 // pred_fallthru
      _
    // Predicated region
    $region6: #{tpu_custom_call.1} parent=1 // pred_check
      _
    $region7: #{tpu_custom_call.1} parent=1 // pred_check_branch
      %21 = sbr.rel (0) target = $region9
    $region8: #{tpu_custom_call.1} parent=1 // pred_region
      %s23 = ssub.s32 1024, 1024
      %24 = vsyncadd [#allocation4], %s23
      %s25 = sshll.u32 [#allocation3], 4
      %s26 = int_to_ptr.vmem [resolvable:$true] %s25
      %31 = dma.hbm_to_vmem [thread:$0]  %s1, 1024, %s26, [#allocation4], 128, 128, 8
    $region9: #{tpu_custom_call.1} parent=1 // pred_fallthru
      _
    // Predicated region
    $region10: #{tpu_custom_call.1} parent=1 // pred_check
      _
    $region11: #{tpu_custom_call.1} parent=1 // pred_check_branch
      %33 = sbr.rel (0) target = $region13
    $region12: #{tpu_custom_call.1} parent=1 // pred_region
      _
    $region13: #{tpu_custom_call.1} parent=1 // pred_fallthru
      _
    // Predicated region
    $region14: #{tpu_custom_call.1} parent=1 // pred_check
      _
    $region15: #{tpu_custom_call.1} parent=1 // pred_check_branch
      %35 = sbr.rel (0) target = $region17
    $region16: #{tpu_custom_call.1} parent=1 // pred_region
      _
    $region17: #{tpu_custom_call.1} parent=1 // pred_fallthru
      _
    // Predicated region
    $region18: #{tpu_custom_call.1} parent=1 // pred_check
      _
    $region19: #{tpu_custom_call.1} parent=1 // pred_check_branch
      %37 = sbr.rel (0) target = $region21
    $region20: #{tpu_custom_call.1} parent=1 // pred_region
      _
    $region21: #{tpu_custom_call.1} parent=1 // pred_fallthru
      _
    // Predicated region
    $region22: #{tpu_custom_call.1} parent=1 // pred_check
      _
    $region23: #{tpu_custom_call.1} parent=1 // pred_check_branch
      %39 = sbr.rel (0) target = $region25
    $region24: #{tpu_custom_call.1} parent=1 // pred_region
      _
    $region25: #{tpu_custom_call.1} parent=1 // pred_fallthru
      _
    // Predicated region
    $region26: #{tpu_custom_call.1} parent=1 // pred_check
      _
    $region27: #{tpu_custom_call.1} parent=1 // pred_check_branch
      %41 = sbr.rel (0) target = $region29
    $region28: #{tpu_custom_call.1} parent=1 // pred_region
      _
    $region29: #{tpu_custom_call.1} parent=1 // pred_fallthru
      _
    // Predicated region
    $region30: #{tpu_custom_call.1} parent=1 // pred_check
      _
    $region31: #{tpu_custom_call.1} parent=1 // pred_check_branch
      %43 = sbr.rel (0) target = $region33
    $region32: #{tpu_custom_call.1} parent=1 // pred_region
      %s45 = ssub.s32 1536, 1536
      %46 = vsyncadd [#allocation7], %s45
      %s47 = sshll.u32 [#allocation6], 4
      %s48 = int_to_ptr.vmem [resolvable:$true] %s47
      %53 = dma.hbm_to_vmem [thread:$0]  %s7, 1536, %s48, [#allocation7], 128, 128, 8
    $region33: #{tpu_custom_call.1} parent=1 // pred_fallthru
      _
    // Predicated region
    $region34: #{tpu_custom_call.1} parent=1 // pred_check
      _
    $region35: #{tpu_custom_call.1} parent=1 // pred_check_branch
      %55 = sbr.rel (0) target = $region37
    $region36: #{tpu_custom_call.1} parent=1 // pred_region
      _
    $region37: #{tpu_custom_call.1} parent=1 // pred_fallthru
      _
    // Predicated region
    $region38: #{tpu_custom_call.1} parent=1 // pred_check
      _
    $region39: #{tpu_custom_call.1} parent=1 // pred_check_branch
      %57 = sbr.rel (0) target = $region41
    $region40: #{tpu_custom_call.1} parent=1 // pred_region
      %58 = dma.done [#allocation4], 1024
    $region41: #{tpu_custom_call.1} parent=1 // pred_fallthru
      _
    // Predicated region
    $region42: #{tpu_custom_call.1} parent=1 // pred_check
      _
    $region43: #{tpu_custom_call.1} parent=1 // pred_check_branch
      %60 = sbr.rel (0) target = $region45
    $region44: #{tpu_custom_call.1} parent=1 // pred_region
      %61 = dma.done [#allocation7], 1536
    $region45: #{tpu_custom_call.1} parent=1 // pred_fallthru
      _
    %v62 = vld [vmem:[%s0] sm:$0xff]
    %v63 = vld [vmem:[%s4] sm:$0xf]
    %v64 = vld [vmem:[%s5] sm:$0x1]
    %v66 = vlaneseq
    %v67 = vshrl.u32 %v66, 7
    %v68 = vsub.s32 0, %v67
    %v69 = vrot.slane %v64, %v68
    %vm71 = vcmask 31744
    %v73 = vsel %vm71, %v62, 0
    %vm75 = vcmask 1043456
    %v77 = vsel %vm75, %v63, 0
    %79 = vmatprep.subr.mxu0 0.0
    %80 = vmatpush1.msra.mxu0 %v77
    %81 = vmatprep.subr.mxu0 0.0
    %82 = vmatpush1.msra.mxu0 0.0
    %83 = vmatprep.subr.mxu0 0.0
    %84 = vmatpush1.msra.mxu0 0.0
    %85 = vmatprep.subr.mxu0 0.0
    %86 = vmatpush1.msra.mxu0 0.0
    %87 = vmatprep.subr.mxu0 0.0
    %88 = vmatpush1.msra.mxu0 0.0
    %89 = vmatprep.subr.mxu0 0.0
    %90 = vmatpush1.msra.mxu0 0.0
    %91 = vmatprep.subr.mxu0 0.0
    %92 = vmatpush1.msra.mxu0 0.0
    %93 = vmatprep.subr.mxu0 0.0
    %94 = vmatpush1.msra.mxu0 0.0
    %95 = vmatprep.subr.mxu0 0.0
    %96 = vmatpush1.msra.mxu0 0.0
    %97 = vmatprep.subr.mxu0 0.0
    %98 = vmatpush1.msra.mxu0 0.0
    %99 = vmatprep.subr.mxu0 0.0
    %100 = vmatpush1.msra.mxu0 0.0
    %101 = vmatprep.subr.mxu0 0.0
    %102 = vmatpush1.msra.mxu0 0.0
    %103 = vmatprep.subr.mxu0 0.0
    %104 = vmatpush1.msra.mxu0 0.0
    %105 = vmatprep.subr.mxu0 0.0
    %106 = vmatpush1.msra.mxu0 0.0
    %107 = vmatprep.subr.mxu0 0.0
    %108 = vmatpush1.msra.mxu0 0.0
    %109 = vmatprep.subr.mxu0 0.0
    %110 = vmatpush1.msra.mxu0 0.0
    %111 = vmatprep.subr.mxu0 0.0
    %112 = vmatpush1.msra.mxu0 0.0
    %113 = vmatprep.subr.mxu0 0.0
    %114 = vmatpush1.msra.mxu0 0.0
    %115 = vmatprep.subr.mxu0 0.0
    %116 = vmatpush1.msra.mxu0 0.0
    %117 = vmatprep.subr.mxu0 0.0
    %118 = vmatpush1.msra.mxu0 0.0
    %119 = vmatprep.subr.mxu0 0.0
    %120 = vmatpush1.msra.mxu0 0.0
    %121 = vmatprep.subr.mxu0 0.0
    %122 = vmatpush1.msra.mxu0 0.0
    %123 = vmatprep.subr.mxu0 0.0
    %124 = vmatpush1.msra.mxu0 0.0
    %125 = vmatprep.subr.mxu0 0.0
    %126 = vmatpush1.msra.mxu0 0.0
    %127 = vmatprep.subr.mxu0 0.0
    %128 = vmatpush1.msra.mxu0 0.0
    %129 = vmatprep.subr.mxu0 0.0
    %130 = vmatpush1.msra.mxu0 0.0
    %131 = vmatprep.subr.mxu0 0.0
    %132 = vmatpush1.msra.mxu0 0.0
    %133 = vmatprep.subr.mxu0 0.0
    %134 = vmatpush1.msra.mxu0 0.0
    %135 = vmatprep.subr.mxu0 0.0
    %136 = vmatpush1.msra.mxu0 0.0
    %137 = vmatprep.subr.mxu0 0.0
    %138 = vmatpush1.msra.mxu0 0.0
    %139 = vmatprep.subr.mxu0 0.0
    %140 = vmatpush1.msra.mxu0 0.0
    %141 = vmatprep.subr.mxu0 0.0
    %142 = vmatpush1.msra.mxu0 0.0
    %143 = vmatprep.mubr.f32.mxu0 0.0
    %144 = vmatmul.mubr.f32.gmra.mrb[0].mxu0 %v73
    %v145 = vpop.f32.mrb[0].mxu0
    %v146 = vadd.f32 %v69, %v145
    %v147 = vpop.f32.mrb[0].mxu0
    %148 = vdwg.mxu0
    %v149 = vld [vmem:[#allocation3] sm:$0xff]
    %v150 = vld [vmem:[#allocation3 + $0x8] sm:$0xff]
    %v151 = vld [vmem:[#allocation3 + $0x10] sm:$0xff]
    %v152 = vld [vmem:[#allocation3 + $0x18] sm:$0xff]
    %v153 = vld [vmem:[#allocation3 + $0x20] sm:$0xff]
    %v154 = vld [vmem:[#allocation3 + $0x28] sm:$0xff]
    %v155 = vld [vmem:[#allocation3 + $0x30] sm:$0xff]
    %v156 = vld [vmem:[#allocation3 + $0x38] sm:$0xff]
    %v157 = vld [vmem:[%s6] sm:$0x1]
    %v159 = vlaneseq
    %v160 = vshrl.u32 %v159, 7
    %v161 = vsub.s32 0, %v160
    %v162 = vrot.slane %v157, %v161
    %v164 = vmul.f32 %v149, %v162
    %v165 = vmul.f32 %v150, %v162
    %v166 = vmul.f32 %v151, %v162
    %v167 = vmul.f32 %v152, %v162
    %v168 = vmul.f32 %v153, %v162
    %v169 = vmul.f32 %v154, %v162
    %v170 = vmul.f32 %v155, %v162
    %v171 = vmul.f32 %v156, %v162
    %vm172 = vcmask 261120
    %v173 = vsel %vm172, %v164, 0.0
    %174 = vadd.xlane.f32.xlu0 %v173
    %v175 = vpop.xlane.xlu0 %174
    %v176 = vsel %vm172, %v165, 0.0
    %177 = vadd.xlane.f32.xlu0 %v176
    %v178 = vpop.xlane.xlu0 %177
    %v179 = vsel %vm172, %v166, 0.0
    %180 = vadd.xlane.f32.xlu0 %v179
    %v181 = vpop.xlane.xlu0 %180
    %v182 = vsel %vm172, %v167, 0.0
    %183 = vadd.xlane.f32.xlu0 %v182
    %v184 = vpop.xlane.xlu0 %183
    %v185 = vsel %vm172, %v168, 0.0
    %186 = vadd.xlane.f32.xlu0 %v185
    %v187 = vpop.xlane.xlu0 %186
    %v188 = vsel %vm172, %v169, 0.0
    %189 = vadd.xlane.f32.xlu0 %v188
    %v190 = vpop.xlane.xlu0 %189
    %v191 = vsel %vm172, %v170, 0.0
    %192 = vadd.xlane.f32.xlu0 %v191
    %v193 = vpop.xlane.xlu0 %192
    %v194 = vsel %vm172, %v171, 0.0
    %195 = vadd.xlane.f32.xlu0 %v194
    %v196 = vpop.xlane.xlu0 %195
    %s197 = sld [smem:[#allocation2]]
    %v198 = vstv %s197
    %v199 = vadd.f32 %v175, %v198
    %v200 = vadd.f32 %v178, %v198
    %v201 = vadd.f32 %v181, %v198
    %v202 = vadd.f32 %v184, %v198
    %v203 = vadd.f32 %v187, %v198
    %v204 = vadd.f32 %v190, %v198
    %v205 = vadd.f32 %v193, %v198
    %v206 = vadd.f32 %v196, %v198
    %v207 = vld [vmem:[%s2] sm:$0xff]
    %v209 = vlaneseq
    %v210 = vshrl.u32 %v209, 7
    %v211 = vsub.s32 0, %v210
    %v212 = vrot.slane %v207, %v211
    %214 = vbcast.lane.b32.xlu0 %v212, 256
    %v215 = vpop.permute.xlu0 %214
    %v216 = vlaneseq
    %v217 = vshrl.u32 %v216, 7
    %v218 = vsub.s32 1, %v217
    %v219 = vrot.slane %v207, %v218
    %221 = vbcast.lane.b32.xlu0 %v219, 256
    %v222 = vpop.permute.xlu0 %221
    %v223 = vlaneseq
    %v224 = vshrl.u32 %v223, 7
    %v225 = vsub.s32 2, %v224
    %v226 = vrot.slane %v207, %v225
    %228 = vbcast.lane.b32.xlu0 %v226, 256
    %v229 = vpop.permute.xlu0 %228
    %v230 = vlaneseq
    %v231 = vshrl.u32 %v230, 7
    %v232 = vsub.s32 3, %v231
    %v233 = vrot.slane %v207, %v232
    %235 = vbcast.lane.b32.xlu0 %v233, 256
    %v236 = vpop.permute.xlu0 %235
    %v237 = vlaneseq
    %v238 = vshrl.u32 %v237, 7
    %v239 = vsub.s32 4, %v238
    %v240 = vrot.slane %v207, %v239
    %242 = vbcast.lane.b32.xlu0 %v240, 256
    %v243 = vpop.permute.xlu0 %242
    %v244 = vlaneseq
    %v245 = vshrl.u32 %v244, 7
    %v246 = vsub.s32 5, %v245
    %v247 = vrot.slane %v207, %v246
    %249 = vbcast.lane.b32.xlu0 %v247, 256
    %v250 = vpop.permute.xlu0 %249
    %v251 = vlaneseq
    %v252 = vshrl.u32 %v251, 7
    %v253 = vsub.s32 6, %v252
    %v254 = vrot.slane %v207, %v253
    %256 = vbcast.lane.b32.xlu0 %v254, 256
    %v257 = vpop.permute.xlu0 %256
    %v258 = vlaneseq
    %v259 = vshrl.u32 %v258, 7
    %v260 = vsub.s32 7, %v259
    %v261 = vrot.slane %v207, %v260
    %263 = vbcast.lane.b32.xlu0 %v261, 256
    %v264 = vpop.permute.xlu0 %263
    %v273 = vadd.f32 %v199, %v215
    %v274 = vadd.f32 %v200, %v222
    %v275 = vadd.f32 %v201, %v229
    %v276 = vadd.f32 %v202, %v236
    %v277 = vadd.f32 %v203, %v243
    %v278 = vadd.f32 %v204, %v250
    %v279 = vadd.f32 %v205, %v257
    %v280 = vadd.f32 %v206, %v264
    %289 = vset.pattern.permute.xlu0 0
    %290 = vperm.xlu0 %289, %v273
    %v291 = vpop.permute.xlu0 %290
    %292 = vset.pattern.permute.xlu0 0
    %293 = vperm.xlu0 %292, %v274
    %v294 = vpop.permute.xlu0 %293
    %295 = vset.pattern.permute.xlu0 0
    %296 = vperm.xlu0 %295, %v275
    %v297 = vpop.permute.xlu0 %296
    %298 = vset.pattern.permute.xlu0 0
    %299 = vperm.xlu0 %298, %v276
    %v300 = vpop.permute.xlu0 %299
    %301 = vset.pattern.permute.xlu0 0
    %302 = vperm.xlu0 %301, %v277
    %v303 = vpop.permute.xlu0 %302
    %304 = vset.pattern.permute.xlu0 0
    %305 = vperm.xlu0 %304, %v278
    %v306 = vpop.permute.xlu0 %305
    %307 = vset.pattern.permute.xlu0 0
    %308 = vperm.xlu0 %307, %v279
    %v309 = vpop.permute.xlu0 %308
    %310 = vset.pattern.permute.xlu0 0
    %311 = vperm.xlu0 %310, %v280
    %v312 = vpop.permute.xlu0 %311
    %v313 = vlaneseq
    %v314 = vand.u32 %v313, 127
    %v315 = vlaneseq
    %v316 = vshrl.u32 %v315, 7
    %v317 = vsub.s32 %v314, %v316
    %v318 = vrot.slane %v291, %v317
    %v319 = vlaneseq
    %v320 = vshrl.u32 %v319, 7
    %v321 = vsub.s32 %v314, %v320
    %v322 = vrot.slane %v294, %v321
    %v323 = vlaneseq
    %v324 = vshrl.u32 %v323, 7
    %v325 = vsub.s32 %v314, %v324
    %v326 = vrot.slane %v297, %v325
    %v327 = vlaneseq
    %v328 = vshrl.u32 %v327, 7
    %v329 = vsub.s32 %v314, %v328
    %v330 = vrot.slane %v300, %v329
    %v331 = vlaneseq
    %v332 = vshrl.u32 %v331, 7
    %v333 = vsub.s32 %v314, %v332
    %v334 = vrot.slane %v303, %v333
    %v335 = vlaneseq
    %v336 = vshrl.u32 %v335, 7
    %v337 = vsub.s32 %v314, %v336
    %v338 = vrot.slane %v306, %v337
    %v339 = vlaneseq
    %v340 = vshrl.u32 %v339, 7
    %v341 = vsub.s32 %v314, %v340
    %v342 = vrot.slane %v309, %v341
    %v343 = vlaneseq
    %v344 = vshrl.u32 %v343, 7
    %v345 = vsub.s32 %v314, %v344
    %v346 = vrot.slane %v312, %v345
    %vm347 = vcmask 1041409
    %v348 = vsel %vm347, %v322, %v318
    %vm349 = vcmask 1042434
    %v350 = vsel %vm349, %v326, %v348
    %vm351 = vcmask 1043459
    %v352 = vsel %vm351, %v330, %v350
    %vm353 = vcmask 1044484
    %v354 = vsel %vm353, %v334, %v352
    %vm355 = vcmask 1045509
    %v356 = vsel %vm355, %v338, %v354
    %vm357 = vcmask 1046534
    %v358 = vsel %vm357, %v342, %v356
    %vm359 = vcmask 1047559
    %v360 = vsel %vm359, %v346, %v358
    %vm362 = vcmask 64512
    %v363 = vsel %vm362, %v360, -inf
    %364 = vmax.xlane.f32.xlu0 %v363
    %v365 = vpop.xlane.xlu0 %364
    %v367 = vlaneseq
    %v368 = vshrl.u32 %v367, 7
    %v369 = vsub.s32 0, %v368
    %v370 = vrot.slane %v365, %v369
    %v371 = vlaneseq
    %v372 = vshrl.u32 %v371, 7
    %v373 = vsub.s32 1, %v372
    %v374 = vrot.slane %v365, %v373
    %v375 = vlaneseq
    %v376 = vshrl.u32 %v375, 7
    %v377 = vsub.s32 2, %v376
    %v378 = vrot.slane %v365, %v377
    %v379 = vlaneseq
    %v380 = vshrl.u32 %v379, 7
    %v381 = vsub.s32 3, %v380
    %v382 = vrot.slane %v365, %v381
    %v383 = vlaneseq
    %v384 = vshrl.u32 %v383, 7
    %v385 = vsub.s32 4, %v384
    %v386 = vrot.slane %v365, %v385
    %v387 = vlaneseq
    %v388 = vshrl.u32 %v387, 7
    %v389 = vsub.s32 5, %v388
    %v390 = vrot.slane %v365, %v389
    %v391 = vlaneseq
    %v392 = vshrl.u32 %v391, 7
    %v393 = vsub.s32 6, %v392
    %v394 = vrot.slane %v365, %v393
    %v395 = vlaneseq
    %v396 = vshrl.u32 %v395, 7
    %v397 = vsub.s32 7, %v396
    %v398 = vrot.slane %v365, %v397
    %v407 = vsub.f32 %v273, %v370
    %v408 = vsub.f32 %v274, %v374
    %v409 = vsub.f32 %v275, %v378
    %v410 = vsub.f32 %v276, %v382
    %v411 = vsub.f32 %v277, %v386
    %v412 = vsub.f32 %v278, %v390
    %v413 = vsub.f32 %v279, %v394
    %v414 = vsub.f32 %v280, %v398
    %v415 = vmul.f32 %v407, 1.442695
    %v416 = vpow.pop %v415
    %v417 = vmul.f32 %v408, 1.442695
    %v418 = vpow.pop %v417
    %v419 = vmul.f32 %v409, 1.442695
    %v420 = vpow.pop %v419
    %v421 = vmul.f32 %v410, 1.442695
    %v422 = vpow.pop %v421
    %v423 = vmul.f32 %v411, 1.442695
    %v424 = vpow.pop %v423
    %v425 = vmul.f32 %v412, 1.442695
    %v426 = vpow.pop %v425
    %v427 = vmul.f32 %v413, 1.442695
    %v428 = vpow.pop %v427
    %v429 = vmul.f32 %v414, 1.442695
    %v430 = vpow.pop %v429
    %439 = vset.pattern.permute.xlu0 0
    %440 = vperm.xlu0 %439, %v416
    %v441 = vpop.permute.xlu0 %440
    %442 = vset.pattern.permute.xlu0 0
    %443 = vperm.xlu0 %442, %v418
    %v444 = vpop.permute.xlu0 %443
    %445 = vset.pattern.permute.xlu0 0
    %446 = vperm.xlu0 %445, %v420
    %v447 = vpop.permute.xlu0 %446
    %448 = vset.pattern.permute.xlu0 0
    %449 = vperm.xlu0 %448, %v422
    %v450 = vpop.permute.xlu0 %449
    %451 = vset.pattern.permute.xlu0 0
    %452 = vperm.xlu0 %451, %v424
    %v453 = vpop.permute.xlu0 %452
    %454 = vset.pattern.permute.xlu0 0
    %455 = vperm.xlu0 %454, %v426
    %v456 = vpop.permute.xlu0 %455
    %457 = vset.pattern.permute.xlu0 0
    %458 = vperm.xlu0 %457, %v428
    %v459 = vpop.permute.xlu0 %458
    %460 = vset.pattern.permute.xlu0 0
    %461 = vperm.xlu0 %460, %v430
    %v462 = vpop.permute.xlu0 %461
    %v463 = vlaneseq
    %v464 = vshrl.u32 %v463, 7
    %v465 = vsub.s32 %v314, %v464
    %v466 = vrot.slane %v441, %v465
    %v467 = vlaneseq
    %v468 = vshrl.u32 %v467, 7
    %v469 = vsub.s32 %v314, %v468
    %v470 = vrot.slane %v444, %v469
    %v471 = vlaneseq
    %v472 = vshrl.u32 %v471, 7
    %v473 = vsub.s32 %v314, %v472
    %v474 = vrot.slane %v447, %v473
    %v475 = vlaneseq
    %v476 = vshrl.u32 %v475, 7
    %v477 = vsub.s32 %v314, %v476
    %v478 = vrot.slane %v450, %v477
    %v479 = vlaneseq
    %v480 = vshrl.u32 %v479, 7
    %v481 = vsub.s32 %v314, %v480
    %v482 = vrot.slane %v453, %v481
    %v483 = vlaneseq
    %v484 = vshrl.u32 %v483, 7
    %v485 = vsub.s32 %v314, %v484
    %v486 = vrot.slane %v456, %v485
    %v487 = vlaneseq
    %v488 = vshrl.u32 %v487, 7
    %v489 = vsub.s32 %v314, %v488
    %v490 = vrot.slane %v459, %v489
    %v491 = vlaneseq
    %v492 = vshrl.u32 %v491, 7
    %v493 = vsub.s32 %v314, %v492
    %v494 = vrot.slane %v462, %v493
    %v495 = vsel %vm347, %v470, %v466
    %v496 = vsel %vm349, %v474, %v495
    %v497 = vsel %vm351, %v478, %v496
    %v498 = vsel %vm353, %v482, %v497
    %v499 = vsel %vm355, %v486, %v498
    %v500 = vsel %vm357, %v490, %v499
    %v501 = vsel %vm359, %v494, %v500
    %v503 = vsel %vm362, %v501, 0.0
    %504 = vadd.xlane.f32.xlu0 %v503
    %v505 = vpop.xlane.xlu0 %504
    %v514 = vmul.f32 %v441, %v149
    %v515 = vmul.f32 %v444, %v150
    %v516 = vmul.f32 %v447, %v151
    %v517 = vmul.f32 %v450, %v152
    %v518 = vmul.f32 %v453, %v153
    %v519 = vmul.f32 %v456, %v154
    %v520 = vmul.f32 %v459, %v155
    %v521 = vmul.f32 %v462, %v156
    %v522 = vsel %vm172, %v514, 0.0
    %v523 = vrot.slane %v522, 4
    %v524 = vadd.f32 %v522, %v523
    %v525 = vrot.slane %v524, 2
    %v526 = vadd.f32 %v524, %v525
    %v527 = vrot.slane %v526, 1
    %v528 = vadd.f32 %v526, %v527
    %v529 = vsel %vm172, %v515, 0.0
    %v530 = vrot.slane %v529, 4
    %v531 = vadd.f32 %v529, %v530
    %v532 = vrot.slane %v531, 2
    %v533 = vadd.f32 %v531, %v532
    %v534 = vrot.slane %v533, 1
    %v535 = vadd.f32 %v533, %v534
    %v536 = vsel %vm172, %v516, 0.0
    %v537 = vrot.slane %v536, 4
    %v538 = vadd.f32 %v536, %v537
    %v539 = vrot.slane %v538, 2
    %v540 = vadd.f32 %v538, %v539
    %v541 = vrot.slane %v540, 1
    %v542 = vadd.f32 %v540, %v541
    %v543 = vsel %vm172, %v517, 0.0
    %v544 = vrot.slane %v543, 4
    %v545 = vadd.f32 %v543, %v544
    %v546 = vrot.slane %v545, 2
    %v547 = vadd.f32 %v545, %v546
    %v548 = vrot.slane %v547, 1
    %v549 = vadd.f32 %v547, %v548
    %v550 = vsel %vm172, %v518, 0.0
    %v551 = vrot.slane %v550, 4
    %v552 = vadd.f32 %v550, %v551
    %v553 = vrot.slane %v552, 2
    %v554 = vadd.f32 %v552, %v553
    %v555 = vrot.slane %v554, 1
    %v556 = vadd.f32 %v554, %v555
    %v557 = vsel %vm172, %v519, 0.0
    %v558 = vrot.slane %v557, 4
    %v559 = vadd.f32 %v557, %v558
    %v560 = vrot.slane %v559, 2
    %v561 = vadd.f32 %v559, %v560
    %v562 = vrot.slane %v561, 1
    %v563 = vadd.f32 %v561, %v562
    %v564 = vsel %vm172, %v520, 0.0
    %v565 = vrot.slane %v564, 4
    %v566 = vadd.f32 %v564, %v565
    %v567 = vrot.slane %v566, 2
    %v568 = vadd.f32 %v566, %v567
    %v569 = vrot.slane %v568, 1
    %v570 = vadd.f32 %v568, %v569
    %v571 = vsel %vm172, %v521, 0.0
    %v572 = vrot.slane %v571, 4
    %v573 = vadd.f32 %v571, %v572
    %v574 = vrot.slane %v573, 2
    %v575 = vadd.f32 %v573, %v574
    %v576 = vrot.slane %v575, 1
    %v577 = vadd.f32 %v575, %v576
    %v578 = vrcp.pop %v505
    %v580 = vrot.slane %v578, 1
    %v581 = vrot.slane %v578, 2
    %v582 = vrot.slane %v578, 3
    %v583 = vrot.slane %v578, 4
    %v584 = vrot.slane %v578, 5
    %v585 = vrot.slane %v578, 6
    %v586 = vrot.slane %v578, 7
    %v595 = vmul.f32 %v528, %v578
    %v596 = vmul.f32 %v535, %v580
    %v597 = vmul.f32 %v542, %v581
    %v598 = vmul.f32 %v549, %v582
    %v599 = vmul.f32 %v556, %v583
    %v600 = vmul.f32 %v563, %v584
    %v601 = vmul.f32 %v570, %v585
    %v602 = vmul.f32 %v577, %v586
    %v603 = vld [vmem:[#allocation6] sm:$0xff]
    %v604 = vld [vmem:[#allocation6 + $0x8] sm:$0xff]
    %v605 = vld [vmem:[#allocation6 + $0x10] sm:$0xff]
    %v606 = vld [vmem:[#allocation6 + $0x18] sm:$0xff]
    %v607 = vld [vmem:[#allocation6 + $0x20] sm:$0xff]
    %v608 = vld [vmem:[#allocation6 + $0x28] sm:$0xff]
    %v609 = vld [vmem:[#allocation6 + $0x30] sm:$0xff]
    %v610 = vld [vmem:[#allocation6 + $0x38] sm:$0xff]
    %v611 = vld [vmem:[#allocation6 + $0x40] sm:$0xff]
    %v612 = vld [vmem:[#allocation6 + $0x48] sm:$0xff]
    %v613 = vld [vmem:[#allocation6 + $0x50] sm:$0xff]
    %v614 = vld [vmem:[#allocation6 + $0x58] sm:$0xff]
    %v623 = vrot.slane %v596, 7
    %v624 = vsel %vm347, %v623, %v595
    %v625 = vrot.slane %v597, 6
    %v626 = vsel %vm349, %v625, %v624
    %v627 = vrot.slane %v598, 5
    %v628 = vsel %vm351, %v627, %v626
    %v629 = vrot.slane %v599, 4
    %v630 = vsel %vm353, %v629, %v628
    %v631 = vrot.slane %v600, 3
    %v632 = vsel %vm355, %v631, %v630
    %v633 = vrot.slane %v601, 2
    %v634 = vsel %vm357, %v633, %v632
    %v635 = vrot.slane %v602, 1
    %v636 = vsel %vm359, %v635, %v634
    %v637 = vsel %vm172, %v636, 0
    %639 = vmatprep.subr.mxu0 0.0
    %640 = vmatpush1.msra.mxu0 %v611
    %641 = vmatprep.subr.mxu0 0.0
    %642 = vmatpush1.msra.mxu0 %v612
    %643 = vmatprep.subr.mxu0 0.0
    %644 = vmatpush1.msra.mxu0 %v613
    %645 = vmatprep.subr.mxu0 0.0
    %646 = vmatpush1.msra.mxu0 %v614
    %647 = vmatprep.subr.mxu0 0.0
    %648 = vmatpush1.msra.mxu0 0.0
    %649 = vmatprep.subr.mxu0 0.0
    %650 = vmatpush1.msra.mxu0 0.0
    %651 = vmatprep.subr.mxu0 0.0
    %652 = vmatpush1.msra.mxu0 0.0
    %653 = vmatprep.subr.mxu0 0.0
    %654 = vmatpush1.msra.mxu0 0.0
    %655 = vmatprep.subr.mxu0 0.0
    %656 = vmatpush1.msra.mxu0 0.0
    %657 = vmatprep.subr.mxu0 0.0
    %658 = vmatpush1.msra.mxu0 0.0
    %659 = vmatprep.subr.mxu0 0.0
    %660 = vmatpush1.msra.mxu0 0.0
    %661 = vmatprep.subr.mxu0 0.0
    %662 = vmatpush1.msra.mxu0 0.0
    %663 = vmatprep.subr.mxu0 0.0
    %664 = vmatpush1.msra.mxu0 0.0
    %665 = vmatprep.subr.mxu0 0.0
    %666 = vmatpush1.msra.mxu0 0.0
    %667 = vmatprep.subr.mxu0 0.0
    %668 = vmatpush1.msra.mxu0 0.0
    %669 = vmatprep.subr.mxu0 0.0
    %670 = vmatpush1.msra.mxu0 0.0
    %671 = vmatprep.subr.mxu0 0.0
    %672 = vmatpush1.msra.mxu0 0.0
    %673 = vmatprep.subr.mxu0 0.0
    %674 = vmatpush1.msra.mxu0 0.0
    %675 = vmatprep.subr.mxu0 0.0
    %676 = vmatpush1.msra.mxu0 0.0
    %677 = vmatprep.subr.mxu0 0.0
    %678 = vmatpush1.msra.mxu0 0.0
    %679 = vmatprep.subr.mxu0 0.0
    %680 = vmatpush1.msra.mxu0 0.0
    %681 = vmatprep.subr.mxu0 0.0
    %682 = vmatpush1.msra.mxu0 0.0
    %683 = vmatprep.subr.mxu0 0.0
    %684 = vmatpush1.msra.mxu0 0.0
    %685 = vmatprep.subr.mxu0 0.0
    %686 = vmatpush1.msra.mxu0 0.0
    %687 = vmatprep.subr.mxu0 0.0
    %688 = vmatpush1.msra.mxu0 0.0
    %689 = vmatprep.subr.mxu0 0.0
    %690 = vmatpush1.msra.mxu0 0.0
    %691 = vmatprep.subr.mxu0 0.0
    %692 = vmatpush1.msra.mxu0 0.0
    %693 = vmatprep.subr.mxu0 0.0
    %694 = vmatpush1.msra.mxu0 0.0
    %695 = vmatprep.subr.mxu0 0.0
    %696 = vmatpush1.msra.mxu0 0.0
    %697 = vmatprep.subr.mxu0 0.0
    %698 = vmatpush1.msra.mxu0 0.0
    %699 = vmatprep.subr.mxu0 0.0
    %700 = vmatpush1.msra.mxu0 0.0
    %701 = vmatprep.subr.mxu0 0.0
    %702 = vmatpush1.msra.mxu0 0.0
    %703 = vmatprep.mubr.f32.mxu0 0.0
    %704 = vmatmul.mubr.f32.gmra.mrb[0].mxu0 %v637
    %v705 = vpop.f32.mrb[0].mxu0
    %v706 = vadd.f32 0.0, %v705
    %v707 = vpop.f32.mrb[0].mxu0
    %708 = vdwg.mxu0
    %vm709 = vcmask 523264
    %v711 = vsel %vm709, %v146, 0
    %713 = vmatprep.subr.mxu0 0.0
    %714 = vmatpush1.msra.mxu0 %v603
    %715 = vmatprep.subr.mxu0 0.0
    %716 = vmatpush1.msra.mxu0 %v604
    %717 = vmatprep.subr.mxu0 0.0
    %718 = vmatpush1.msra.mxu0 %v605
    %719 = vmatprep.subr.mxu0 0.0
    %720 = vmatpush1.msra.mxu0 %v606
    %721 = vmatprep.subr.mxu0 0.0
    %722 = vmatpush1.msra.mxu0 %v607
    %723 = vmatprep.subr.mxu0 0.0
    %724 = vmatpush1.msra.mxu0 %v608
    %725 = vmatprep.subr.mxu0 0.0
    %726 = vmatpush1.msra.mxu0 %v609
    %727 = vmatprep.subr.mxu0 0.0
    %728 = vmatpush1.msra.mxu0 %v610
    %729 = vmatprep.subr.mxu0 0.0
    %730 = vmatpush1.msra.mxu0 0.0
    %731 = vmatprep.subr.mxu0 0.0
    %732 = vmatpush1.msra.mxu0 0.0
    %733 = vmatprep.subr.mxu0 0.0
    %734 = vmatpush1.msra.mxu0 0.0
    %735 = vmatprep.subr.mxu0 0.0
    %736 = vmatpush1.msra.mxu0 0.0
    %737 = vmatprep.subr.mxu0 0.0
    %738 = vmatpush1.msra.mxu0 0.0
    %739 = vmatprep.subr.mxu0 0.0
    %740 = vmatpush1.msra.mxu0 0.0
    %741 = vmatprep.subr.mxu0 0.0
    %742 = vmatpush1.msra.mxu0 0.0
    %743 = vmatprep.subr.mxu0 0.0
    %744 = vmatpush1.msra.mxu0 0.0
    %745 = vmatprep.subr.mxu0 0.0
    %746 = vmatpush1.msra.mxu0 0.0
    %747 = vmatprep.subr.mxu0 0.0
    %748 = vmatpush1.msra.mxu0 0.0
    %749 = vmatprep.subr.mxu0 0.0
    %750 = vmatpush1.msra.mxu0 0.0
    %751 = vmatprep.subr.mxu0 0.0
    %752 = vmatpush1.msra.mxu0 0.0
    %753 = vmatprep.subr.mxu0 0.0
    %754 = vmatpush1.msra.mxu0 0.0
    %755 = vmatprep.subr.mxu0 0.0
    %756 = vmatpush1.msra.mxu0 0.0
    %757 = vmatprep.subr.mxu0 0.0
    %758 = vmatpush1.msra.mxu0 0.0
    %759 = vmatprep.subr.mxu0 0.0
    %760 = vmatpush1.msra.mxu0 0.0
    %761 = vmatprep.subr.mxu0 0.0
    %762 = vmatpush1.msra.mxu0 0.0
    %763 = vmatprep.subr.mxu0 0.0
    %764 = vmatpush1.msra.mxu0 0.0
    %765 = vmatprep.subr.mxu0 0.0
    %766 = vmatpush1.msra.mxu0 0.0
    %767 = vmatprep.subr.mxu0 0.0
    %768 = vmatpush1.msra.mxu0 0.0
    %769 = vmatprep.subr.mxu0 0.0
    %770 = vmatpush1.msra.mxu0 0.0
    %771 = vmatprep.subr.mxu0 0.0
    %772 = vmatpush1.msra.mxu0 0.0
    %773 = vmatprep.subr.mxu0 0.0
    %774 = vmatpush1.msra.mxu0 0.0
    %775 = vmatprep.subr.mxu0 0.0
    %776 = vmatpush1.msra.mxu0 0.0
    %777 = vmatprep.mubr.f32.mxu0 0.0
    %778 = vmatmul.mubr.f32.gmra.mrb[0].mxu0 %v711
    %v779 = vpop.f32.mrb[0].mxu0
    %v780 = vadd.f32 %v706, %v779
    %v781 = vpop.f32.mrb[0].mxu0
    %782 = vdwg.mxu0
    %v783 = vld [vmem:[%s8] sm:$0x1]
    %v785 = vlaneseq
    %v786 = vshrl.u32 %v785, 7
    %v787 = vsub.s32 0, %v786
    %v788 = vrot.slane %v783, %v787
    %v790 = vadd.f32 %v780, %v788
    %791 = vst [vmem:[#allocation8] sm:$0xff] %v790
    // Predicated region
    $region46: #{tpu_custom_call.1} parent=1 // pred_check
      _
    $region47: #{tpu_custom_call.1} parent=1 // pred_check_branch
      %793 = sbr.rel (0) target = $region49
    $region48: #{tpu_custom_call.1} parent=1 // pred_region
      %s795 = ssub.s32 128, 128
      %796 = vsyncadd [#allocation5], %s795
      %s798 = sshll.u32 [#allocation8], 4
      %s799 = int_to_ptr.vmem [resolvable:$true] %s798
      %801 = dma.vmem_to_hbm [thread:$0]  %s799, 128, %s9, [#allocation5]
    $region49: #{tpu_custom_call.1} parent=1 // pred_fallthru
      _
    // Predicated region
    $region50: #{tpu_custom_call.1} parent=1 // pred_check
      _
    $region51: #{tpu_custom_call.1} parent=1 // pred_check_branch
      %803 = sbr.rel (0) target = $region53
    $region52: #{tpu_custom_call.1} parent=1 // pred_region
      %804 = dma.done [#allocation5], 128
    $region53: #{tpu_custom_call.1} parent=1 // pred_fallthru
      _
    %805 = vsyncpa [#allocation4], 1
    %806 = vsyncpa [#allocation7], 1
    %807 = vsyncpa [#allocation5], 1

</llo_original>
